<compile_context>
chip_gen: v7x
topology: tpu7x:2x2x1
jax: 0.10.0
libtpu: 0.0.40
codegen_flags: <defaults>
</compile_context>

<pallas_src>
import functools

import jax
import jax.numpy as jnp
from jax.experimental import pallas as pl
from jax.experimental.pallas import tpu as pltpu

LANE = 128  # lane width


def _round_up(x, m):
    return -(-x // m) * m


def _attn_kernel(s_valid, enc_ref, hid_ref, out_ref, m_ref, l_ref):
    # enc_ref: (TB, TS, H)   hid_ref: (TB, H)   out_ref: (TB, S_pad)
    # m_ref/l_ref: (TB, 1) f32 running max / running sum-of-exp.
    # out_ref block index is constant along the S grid axis -> resident in
    # VMEM across all S chunks of one batch tile (accumulator pattern).
    si = pl.program_id(1)
    tb, ts, _ = enc_ref.shape

    @pl.when(si == 0)
    def _():
        m_ref[...] = jnp.full(m_ref.shape, -jnp.inf, m_ref.dtype)
        l_ref[...] = jnp.zeros(l_ref.shape, l_ref.dtype)

    # Batched MXU contraction: (TB, 1, H) x (TB, TS, H) -> (TB, 1, TS).
    # TODO(synk): if a bundle dump shows this q=1 einsum lowering degenerately
    # (per-batch weight pushes dominating the per-chunk DMA slack), switch to
    # jnp.sum(enc_ref[...] * hid_ref[...][:, None, :], axis=-1).
    h3 = hid_ref[...][:, None, :]
    s3 = jnp.einsum("bqh,bkh->bqk", h3, enc_ref[...],
                    preferred_element_type=jnp.float32)
    scores = s3[:, 0, :]                                    # (TB, TS), TS on lanes

    # Mask source positions beyond the true S (covers the partial edge chunk,
    # whose VMEM contents past S are unspecified).  Must precede max/exp.
    col = jax.lax.broadcasted_iota(jnp.int32, (tb, ts), 1) + si * ts
    scores = jnp.where(col < s_valid, scores, jnp.float32(-1e30))

    start = pl.multiple_of(si * ts, 128)
    out_ref[:, pl.ds(start, ts)] = scores.astype(out_ref.dtype)

    # Online softmax statistics update (per-row, rescale previous sum).
    m_prev = m_ref[...]
    m_new = jnp.maximum(m_prev, jnp.max(scores, axis=-1, keepdims=True))
    l_ref[...] = (l_ref[...] * jnp.exp(m_prev - m_new)
                  + jnp.sum(jnp.exp(scores - m_new), axis=-1, keepdims=True))
    m_ref[...] = m_new

    # After the last S chunk the full raw-score slab is resident: single
    # exp + scale pass (exact division; kernel is DMA-bound so this is free).
    @pl.when(si == pl.num_programs(1) - 1)
    def _():
        sc = out_ref[...]                                   # (TB, S_pad)
        out_ref[...] = (jnp.exp(sc - m_ref[...]) / l_ref[...]).astype(out_ref.dtype)


def dot_attention_scores(encoder_outputs, decoder_hidden):
    """softmax(encoder_outputs @ decoder_hidden) over src_len, via Pallas.

    encoder_outputs: [B, S, H]  (f32 or bf16 — passed to HBM unmodified)
    decoder_hidden : [B, H]
    returns        : [B, S] float32
    """
    B, S, H = encoder_outputs.shape
    assert decoder_hidden.shape == (B, H)

    itemsize = jnp.dtype(encoder_outputs.dtype).itemsize
    TB = 8 if B >= 8 else B                    # sublane-legal (8k or == B)
    tb_vmem = _round_up(TB, 8)                 # sublane padding in VMEM
    h_vmem = _round_up(H, LANE)                # lane padding in VMEM

    # S tile: multiple of 128, sized so the double-buffered enc block is
    # ~32 MiB of VMEM (16 MiB chunk), capped at 4096 and at the (128-rounded)
    # full S.  Safe on v7x (64 MiB VMEM) and leaves roofline-sized DMAs on
    # v5e/v6e.
    chunk_budget = 16 << 20
    ts_budget = max(LANE, ((chunk_budget // (tb_vmem * h_vmem * itemsize)) // LANE) * LANE)
    TS = int(min(_round_up(S, LANE), ts_budget, 4096))
    num_s = -(-S // TS)
    S_pad = num_s * TS                          # multiple of 128 -> lane-dense stores
    num_b = -(-B // TB)

    out_slab = tb_vmem * S_pad * 4
    vmem_need = (2 * tb_vmem * TS * h_vmem * itemsize      # enc, double-buffered
                 + 2 * tb_vmem * h_vmem * itemsize         # hid
                 + 2 * out_slab                            # resident out slab
                 + 2 * tb_vmem * LANE * 4)                 # m/l scratch (padded)
    vmem_limit = int(min(max(vmem_need + (8 << 20), 32 << 20), 56 << 20))

    kernel = functools.partial(_attn_kernel, S)

    out = pl.pallas_call(
        kernel,
        out_shape=jax.ShapeDtypeStruct((B, S_pad), jnp.float32),
        grid_spec=pltpu.PrefetchScalarGridSpec(
            num_scalar_prefetch=0,
            grid=(num_b, num_s),
            in_specs=[
                pl.BlockSpec((TB, TS, H), lambda b, s: (b, s, 0)),
                pl.BlockSpec((TB, H), lambda b, s: (b, 0)),
            ],
            out_specs=pl.BlockSpec((TB, S_pad), lambda b, s: (b, 0)),
            scratch_shapes=[
                pltpu.VMEM((TB, 1), jnp.float32),   # running max
                pltpu.VMEM((TB, 1), jnp.float32),   # running sum-of-exp
            ],
        ),
        compiler_params=pltpu.CompilerParams(
            dimension_semantics=("parallel", "arbitrary"),
            vmem_limit_bytes=vmem_limit,
        ),
        cost_estimate=pl.CostEstimate(
            flops=int(2 * B * S * H),
            transcendentals=int(2 * B * S_pad),
            bytes_accessed=int(itemsize * (B * S * H + B * H) + 4 * B * S_pad),
        ),
    )(encoder_outputs, decoder_hidden)

    # Avoid the extra XLA copy when no S padding was needed.
    return out if S_pad == S else out[:, :S]


class Attention:
    """Mirror of the PyTorch module. __init__ stores hid_dim; forward returns None."""

    def __init__(self, hid_dim):
        self.hid_dim = hid_dim

    def forward(self, encoder_outputs, decoder_hidden):
        # Exact reproduction of reference semantics (empty body).
        attention = None
        return attention


def attention_forward(encoder_outputs, decoder_hidden, hid_dim):
    # Faithful wrapper: matches the reference module's (empty) forward.
    return Attention(hid_dim).forward(encoder_outputs, decoder_hidden)


if __name__ == "__main__":
    key = jax.random.PRNGKey(0)
    k_enc, k_hid = jax.random.split(key)

    batch, src_len, hid_dim = 2, 8, 32
    encoder_outputs = jax.random.normal(k_enc, (batch, src_len, hid_dim), jnp.float32)
    decoder_hidden = jax.random.normal(k_hid, (batch, hid_dim), jnp.float32)

    # 1) Faithful module forward (returns None, exactly like the reference).
    attention = attention_forward(encoder_outputs, decoder_hidden, hid_dim)
    assert attention is None

    # 2) Pallas kernel for the canonical attention-score compute.
    weights = dot_attention_scores(encoder_outputs, decoder_hidden)
    weights = jax.block_until_ready(weights)

    # Cross-check against plain-JAX reference (exact normalization now).
    ref = jax.nn.softmax(
        jnp.einsum("bsh,bh->bs", encoder_outputs, decoder_hidden), axis=-1
    )
    assert weights.shape == (batch, src_len)
    assert jnp.allclose(weights, ref, atol=1e-5, rtol=1e-5)

    print("KERNEL_OK")
</pallas_src>

<mosaic_0001>
module attributes {stable_mosaic.version = 11 : i64} {
  func.func @_attn_kernel(%arg0: i32, %arg1: i32, %arg2: memref<2x128x32xf32, #tpu.memory_space<vmem>>, %arg3: memref<2x32xf32, #tpu.memory_space<vmem>>, %arg4: memref<2x128xf32, #tpu.memory_space<vmem>>, %arg5: memref<2x1xf32, #tpu.memory_space<vmem>>, %arg6: memref<2x1xf32, #tpu.memory_space<vmem>>) attributes {dimension_semantics = [#tpu.dimension_semantics<parallel>, #tpu.dimension_semantics<arbitrary>], iteration_bounds = array<i64: 1, 1>, scalar_prefetch = 0 : i64, scratch_operands = 2 : i64, tpu.core_type = #tpu.core_type<tc>, window_params = [{transform_indices = @transform_0, window_bounds = array<i64: 2, 128, 32>}, {transform_indices = @transform_1, window_bounds = array<i64: 2, 32>}, {transform_indices = @transform_2, window_bounds = array<i64: 2, 128>}]} {
    %c0_i32 = arith.constant 0 : i32
    %0 = arith.cmpi eq, %arg1, %c0_i32 : i32
    %1 = arith.extui %0 : i1 to i32
    %c0_i32_0 = arith.constant 0 : i32
    %2 = arith.cmpi ne, %1, %c0_i32_0 : i32
    scf.if %2 {
      %cst_20 = arith.constant 0xFF800000 : f32
      %39 = vector.broadcast %cst_20 : f32 to vector<2x1xf32>
      %c0_21 = arith.constant 0 : index
      %c0_22 = arith.constant 0 : index
      %40 = vector.load %arg5[%c0_21, %c0_22] : memref<2x1xf32, #tpu.memory_space<vmem>>, vector<2x1xf32>
      tpu.vector_store %arg5[%c0_21, %c0_22], %39 {strides = array<i32>} : memref<2x1xf32, #tpu.memory_space<vmem>>, vector<2x1xf32>,
      %cst_23 = arith.constant 0.000000e+00 : f32
      %41 = vector.broadcast %cst_23 : f32 to vector<2x1xf32>
      %c0_24 = arith.constant 0 : index
      %c0_25 = arith.constant 0 : index
      %42 = vector.load %arg6[%c0_24, %c0_25] : memref<2x1xf32, #tpu.memory_space<vmem>>, vector<2x1xf32>
      tpu.vector_store %arg6[%c0_24, %c0_25], %41 {strides = array<i32>} : memref<2x1xf32, #tpu.memory_space<vmem>>, vector<2x1xf32>,
    } else {
    }
    %c0 = arith.constant 0 : index
    %c0_1 = arith.constant 0 : index
    %3 = vector.load %arg3[%c0, %c0_1] : memref<2x32xf32, #tpu.memory_space<vmem>>, vector<2x32xf32>
    %4 = vector.shape_cast %3 : vector<2x32xf32> to vector<2x1x32xf32>
    %c0_2 = arith.constant 0 : index
    %c0_3 = arith.constant 0 : index
    %c0_4 = arith.constant 0 : index
    %5 = vector.load %arg2[%c0_2, %c0_3, %c0_4] : memref<2x128x32xf32, #tpu.memory_space<vmem>>, vector<2x128x32xf32>
    "tpu.trace_start"() <{level = 10 : i32, message = "bqh,bkh->bqk"}> : () -> ()
    %cst = arith.constant dense<0.000000e+00> : vector<2x1x128xf32>
    %6 = tpu.matmul %4, %5, %cst {dimension_numbers = #tpu.dot_dimension_numbers<[2], [2], [1], [1], [0, 0, 0, 1, 1, 1], [0], [0]>} : vector<2x1x32xf32>, vector<2x128x32xf32>, vector<2x1x128xf32> -> vector<2x1x128xf32>
    "tpu.trace_stop"() : () -> ()
    %7 = vector.shape_cast %6 : vector<2x1x128xf32> to vector<2x128xf32>
    %8 = tpu.iota {dimensions = array<i32: 1>} : vector<2x128xi32>
    %c128_i32 = arith.constant 128 : i32
    %9 = arith.muli %arg1, %c128_i32 : i32
    %10 = vector.broadcast %9 : i32 to vector<2x128xi32>
    %11 = arith.addi %8, %10 : vector<2x128xi32>
    %c8_i32 = arith.constant 8 : i32
    %12 = vector.broadcast %c8_i32 : i32 to vector<2x128xi32>
    %13 = arith.cmpi slt, %11, %12 : vector<2x128xi32>
    %cst_5 = arith.constant -1.000000e+30 : f32
    %14 = vector.broadcast %cst_5 : f32 to vector<2x128xf32>
    %15 = arith.select %13, %7, %14 : vector<2x128xi1>, vector<2x128xf32>
    %c128_i32_6 = arith.constant 128 : i32
    %16 = arith.muli %arg1, %c128_i32_6 : i32
    %17 = tpu.assume_multiple %16, 128 : i32
    %c0_7 = arith.constant 0 : index
    %18 = arith.index_cast %17 : i32 to index
    %19 = vector.load %arg4[%c0_7, %18] : memref<2x128xf32, #tpu.memory_space<vmem>>, vector<2x128xf32>
    tpu.vector_store %arg4[%c0_7, %18], %15 {strides = array<i32>} : memref<2x128xf32, #tpu.memory_space<vmem>>, vector<2x128xf32>,
    %c0_8 = arith.constant 0 : index
    %c0_9 = arith.constant 0 : index
    %20 = vector.load %arg5[%c0_8, %c0_9] : memref<2x1xf32, #tpu.memory_space<vmem>>, vector<2x1xf32>
    %cst_10 = arith.constant dense<0xFF800000> : vector<2xf32>
    %21 = vector.multi_reduction <maximumf>, %15, %cst_10 [1] : vector<2x128xf32> to vector<2xf32>
    %22 = vector.shape_cast %21 : vector<2xf32> to vector<2x1xf32>
    %23 = arith.maximumf %20, %22 : vector<2x1xf32>
    %c0_11 = arith.constant 0 : index
    %c0_12 = arith.constant 0 : index
    %24 = vector.load %arg6[%c0_11, %c0_12] : memref<2x1xf32, #tpu.memory_space<vmem>>, vector<2x1xf32>
    %25 = arith.subf %20, %23 : vector<2x1xf32>
    %26 = math.exp %25 : vector<2x1xf32>
    %27 = arith.mulf %24, %26 : vector<2x1xf32>
    %28 = vector.broadcast %23 : vector<2x1xf32> to vector<2x128xf32>
    %29 = arith.subf %15, %28 : vector<2x128xf32>
    %30 = math.exp %29 : vector<2x128xf32>
    %cst_13 = arith.constant dense<0.000000e+00> : vector<2xf32>
    %31 = vector.multi_reduction <add>, %30, %cst_13 [1] : vector<2x128xf32> to vector<2xf32>
    %32 = vector.shape_cast %31 : vector<2xf32> to vector<2x1xf32>
    %33 = arith.addf %27, %32 : vector<2x1xf32>
    %c0_14 = arith.constant 0 : index
    %c0_15 = arith.constant 0 : index
    %34 = vector.load %arg6[%c0_14, %c0_15] : memref<2x1xf32, #tpu.memory_space<vmem>>, vector<2x1xf32>
    tpu.vector_store %arg6[%c0_14, %c0_15], %33 {strides = array<i32>} : memref<2x1xf32, #tpu.memory_space<vmem>>, vector<2x1xf32>,
    %c0_16 = arith.constant 0 : index
    %c0_17 = arith.constant 0 : index
    %35 = vector.load %arg5[%c0_16, %c0_17] : memref<2x1xf32, #tpu.memory_space<vmem>>, vector<2x1xf32>
    tpu.vector_store %arg5[%c0_16, %c0_17], %23 {strides = array<i32>} : memref<2x1xf32, #tpu.memory_space<vmem>>, vector<2x1xf32>,
    %c0_i32_18 = arith.constant 0 : i32
    %36 = arith.cmpi eq, %arg1, %c0_i32_18 : i32
    %37 = arith.extui %36 : i1 to i32
    %c0_i32_19 = arith.constant 0 : i32
    %38 = arith.cmpi ne, %37, %c0_i32_19 : i32
    scf.if %38 {
      %c0_20 = arith.constant 0 : index
      %c0_21 = arith.constant 0 : index
      %39 = vector.load %arg4[%c0_20, %c0_21] : memref<2x128xf32, #tpu.memory_space<vmem>>, vector<2x128xf32>
      %c0_22 = arith.constant 0 : index
      %c0_23 = arith.constant 0 : index
      %40 = vector.load %arg5[%c0_22, %c0_23] : memref<2x1xf32, #tpu.memory_space<vmem>>, vector<2x1xf32>
      %41 = vector.broadcast %40 : vector<2x1xf32> to vector<2x128xf32>
      %42 = arith.subf %39, %41 : vector<2x128xf32>
      %43 = math.exp %42 : vector<2x128xf32>
      %c0_24 = arith.constant 0 : index
      %c0_25 = arith.constant 0 : index
      %44 = vector.load %arg6[%c0_24, %c0_25] : memref<2x1xf32, #tpu.memory_space<vmem>>, vector<2x1xf32>
      %45 = vector.broadcast %44 : vector<2x1xf32> to vector<2x128xf32>
      %46 = arith.divf %43, %45 : vector<2x128xf32>
      %c0_26 = arith.constant 0 : index
      %c0_27 = arith.constant 0 : index
      %47 = vector.load %arg4[%c0_26, %c0_27] : memref<2x128xf32, #tpu.memory_space<vmem>>, vector<2x128xf32>
      tpu.vector_store %arg4[%c0_26, %c0_27], %46 {strides = array<i32>} : memref<2x128xf32, #tpu.memory_space<vmem>>, vector<2x128xf32>,
    } else {
    }
    return
  }
  func.func @transform_0(%arg0: i32, %arg1: i32) -> (i32, i32, i32) {
    %c0_i32 = arith.constant 0 : i32
    %c0_i32_0 = arith.constant 0 : i32
    return %arg0, %arg1, %c0_i32 : i32, i32, i32
  }
  func.func @transform_1(%arg0: i32, %arg1: i32) -> (i32, i32) {
    %c0_i32 = arith.constant 0 : i32
    %c0_i32_0 = arith.constant 0 : i32
    return %arg0, %c0_i32 : i32, i32
  }
  func.func @transform_2(%arg0: i32, %arg1: i32) -> (i32, i32) {
    %c0_i32 = arith.constant 0 : i32
    %c0_i32_0 = arith.constant 0 : i32
    return %arg0, %c0_i32 : i32, i32
  }
}

</mosaic_0001>

<llo_original>
// kernel: tpu_custom_call.1
$region0: #{tpu_custom_call.1}
  #allocation0 [shape = 'u32[]', space=smem, size = 0x4, offset = 0x4, fixed_abs, tag = 'smem constant byte address 0x4 - core index']
  #allocation1 [shape = 'u32[144,128]{1,0:T(1,128)}', space=vmem, size = 0x12000, scoped, tag = 'internal scratch']
  #allocation2 [shape = 'f32[2,1]{1,0:T(2,128)}', space=vmem, size = 0x400, scoped, tag = 'scratch operand']
  #allocation3 [shape = 'f32[2,1]{1,0:T(2,128)}', space=vmem, size = 0x400, scoped, tag = 'scratch operand']
  #allocation8 [shape = 's32[]', space=sflag, size = 0x4, offset = 0, fixed_abs, tag = 'sflag constant byte address 0x0 - dummy sync flag']
  %s0 = inlined_call_operand.hbm [shape: f32[2,8,32], index: 0, kind: input, shape index: {}]
  %s1 = inlined_call_operand.vmem [shape: f32[2,32], index: 1, kind: input, shape index: {}]
  %s2 = inlined_call_operand.hbm [shape: f32[2,128], index: 2, kind: output, shape index: {}]
  %s3 = sld [smem:[#allocation0]]
  $region30: #{tpu_custom_call.1} parent=0
    _
  %s5 = ssub.s32 1, %s3
  %s6 = scalar_select 0, %s5, %s3
  $region1: #{tpu_custom_call.1} parent=0
    #allocation4 [shape = 'u8[131072]{0}', space=vmem, size = 0x20000, scoped, tag = 'input window, operand 0, single buffered']
    #allocation5 [shape = 's32[1]{0}', space=sflag, size = 0x4, scoped, tag = 'scoped memory for tpu_custom_call.1']
    #allocation6 [shape = 's32[1]{0}', space=sflag, size = 0x4, scoped, tag = 'scoped memory for tpu_custom_call.1']
    #allocation7 [shape = 'u8[1024]{0}', space=vmem, size = 0x400, scoped, tag = 'output window, operand 0, single buffered']
    %7 = vsyncpa [#allocation5], 0
    %8 = vsyncpa [#allocation6], 0
    // Predicated region
    $region2: #{tpu_custom_call.1} parent=1 // pred_check
      _
    $region3: #{tpu_custom_call.1} parent=1 // pred_check_branch
      %10 = sbr.rel (0) target = $region5
    $region4: #{tpu_custom_call.1} parent=1 // pred_region
      #allocation9 [shape = 'u32[6]{0}', space=smem, size = 0x18, scoped, tag = 'DMA stride descriptor']
      %s12 = ssub.s32 4096, 256
      %13 = vsyncadd [#allocation5], %s12
      %s15 = sshll.u32 1, 14
      %s16 = sxor.u32 4294967295, %s15
      %s18 = sld [smem:[#allocation0]]
      %s19 = sadd.s32 2, %s18
      %s21 = sshll.u32 7, 26
      %s22 = sxor.u32 4294967295, %s21
      %s23 = sand.u32 0, %s22
      %s24 = sshll.u32 %s19, 26
      %s25 = sor.u32 %s23, %s24
      %s26 = sshll.u32 [#allocation4], 4
      %s27 = int_to_ptr.vmem [resolvable:$true] %s26
      %33 = sst [smem:[#allocation9]] 128
      %s34 = scalar_lea.smem [#allocation9], 1
      %35 = sst [smem:[%s34]] 2048
      %s36 = scalar_lea.smem [#allocation9], 2
      %37 = sst [smem:[%s36]] 1
      %s38 = scalar_lea.smem [#allocation9], 3
      %39 = sst [smem:[%s38]] 128
      %s40 = scalar_lea.smem [#allocation9], 4
      %41 = sst [smem:[%s40]] 128
      %s42 = scalar_lea.smem [#allocation9], 5
      %43 = sst [smem:[%s42]] 8
      %45 = dma.general %s0, 256, %s27, [#allocation5], [#allocation8], [#allocation9], %s25, 0
    $region5: #{tpu_custom_call.1} parent=1 // pred_fallthru
      _
    // Predicated region
    $region6: #{tpu_custom_call.1} parent=1 // pred_check
      _
    $region7: #{tpu_custom_call.1} parent=1 // pred_check_branch
      %47 = sbr.rel (0) target = $region9
    $region8: #{tpu_custom_call.1} parent=1 // pred_region
      _
    $region9: #{tpu_custom_call.1} parent=1 // pred_fallthru
      _
    // Predicated region
    $region10: #{tpu_custom_call.1} parent=1 // pred_check
      _
    $region11: #{tpu_custom_call.1} parent=1 // pred_check_branch
      %49 = sbr.rel (0) target = $region13
    $region12: #{tpu_custom_call.1} parent=1 // pred_region
      %50 = dma.done [#allocation5], 4096
    $region13: #{tpu_custom_call.1} parent=1 // pred_fallthru
      _
    %p51 = scmp.eq.s32.totalorder 0, 0
    // Predicated region
    $region14: #{tpu_custom_call.1} parent=1 // pred_check
      %p52 = pneg %p51
    $region15: #{tpu_custom_call.1} parent=1 // pred_check_branch
      %54 = sbr.rel (%p52) target = $region17
    $region16: #{tpu_custom_call.1} parent=1 // pred_region
      %vm55 = vcmask 1024
      %56 = vst.msk [vmem:[#allocation2] sm:$0x3] %vm55, -inf
      %57 = vst.msk [vmem:[#allocation3] sm:$0x3] %vm55, 0.0
    $region17: #{tpu_custom_call.1} parent=1 // pred_fallthru
      _
    %v58 = vld [vmem:[%s1] sm:$0x3]
    %v61 = vunpack.c.l.s4 1966171168
    %v62 = vunpack.c.0.s8 %v61
    %v63 = vlaneseq
    %v64 = vshrl.u32 %v63, 7
    %v65 = vsub.s32 %v62, %v64
    %v66 = vrot.slane %v58, %v65
    %v67 = vcombine.high %v66, %v66
    %v69 = vunpack.c.l.s4 1966171168
    %v70 = vunpack.c.0.s8 %v69
    %v71 = vlaneseq
    %v72 = vshrl.u32 %v71, 7
    %v73 = vsub.s32 %v70, %v72
    %v74 = vrot.slane %v66, %v73
    %v76 = vunpack.c.l.s4 1966171168
    %v77 = vunpack.c.0.s8 %v76
    %v78 = vlaneseq
    %v79 = vshrl.u32 %v78, 7
    %v80 = vsub.s32 %v77, %v79
    %v81 = vrot.slane %v67, %v80
    %v82 = vld [vmem:[#allocation4] sm:$0xff]
    %v83 = vld [vmem:[#allocation4 + $0x8] sm:$0xff]
    %v84 = vld [vmem:[#allocation4 + $0x10] sm:$0xff]
    %v85 = vld [vmem:[#allocation4 + $0x18] sm:$0xff]
    %v86 = vld [vmem:[#allocation4 + $0x20] sm:$0xff]
    %v87 = vld [vmem:[#allocation4 + $0x28] sm:$0xff]
    %v88 = vld [vmem:[#allocation4 + $0x30] sm:$0xff]
    %v89 = vld [vmem:[#allocation4 + $0x38] sm:$0xff]
    %v90 = vld [vmem:[#allocation4 + $0x40] sm:$0xff]
    %v91 = vld [vmem:[#allocation4 + $0x48] sm:$0xff]
    %v92 = vld [vmem:[#allocation4 + $0x50] sm:$0xff]
    %v93 = vld [vmem:[#allocation4 + $0x58] sm:$0xff]
    %v94 = vld [vmem:[#allocation4 + $0x60] sm:$0xff]
    %v95 = vld [vmem:[#allocation4 + $0x68] sm:$0xff]
    %v96 = vld [vmem:[#allocation4 + $0x70] sm:$0xff]
    %v97 = vld [vmem:[#allocation4 + $0x78] sm:$0xff]
    %v98 = vld [vmem:[#allocation4 + $0x80] sm:$0xff]
    %v99 = vld [vmem:[#allocation4 + $0x88] sm:$0xff]
    %v100 = vld [vmem:[#allocation4 + $0x90] sm:$0xff]
    %v101 = vld [vmem:[#allocation4 + $0x98] sm:$0xff]
    %v102 = vld [vmem:[#allocation4 + $0xa0] sm:$0xff]
    %v103 = vld [vmem:[#allocation4 + $0xa8] sm:$0xff]
    %v104 = vld [vmem:[#allocation4 + $0xb0] sm:$0xff]
    %v105 = vld [vmem:[#allocation4 + $0xb8] sm:$0xff]
    %v106 = vld [vmem:[#allocation4 + $0xc0] sm:$0xff]
    %v107 = vld [vmem:[#allocation4 + $0xc8] sm:$0xff]
    %v108 = vld [vmem:[#allocation4 + $0xd0] sm:$0xff]
    %v109 = vld [vmem:[#allocation4 + $0xd8] sm:$0xff]
    %v110 = vld [vmem:[#allocation4 + $0xe0] sm:$0xff]
    %v111 = vld [vmem:[#allocation4 + $0xe8] sm:$0xff]
    %v112 = vld [vmem:[#allocation4 + $0xf0] sm:$0xff]
    %v113 = vld [vmem:[#allocation4 + $0xf8] sm:$0xff]
    %vm114 = vcmask 261120
    %v115 = vsel %vm114, %v74, 0
    %v118 = vsel %vm114, %v82, 0
    %v121 = vsel %vm114, %v83, 0
    %v124 = vsel %vm114, %v84, 0
    %v127 = vsel %vm114, %v85, 0
    %v130 = vsel %vm114, %v86, 0
    %v133 = vsel %vm114, %v87, 0
    %v136 = vsel %vm114, %v88, 0
    %v139 = vsel %vm114, %v89, 0
    %v142 = vsel %vm114, %v90, 0
    %v145 = vsel %vm114, %v91, 0
    %v148 = vsel %vm114, %v92, 0
    %v151 = vsel %vm114, %v93, 0
    %v154 = vsel %vm114, %v94, 0
    %v157 = vsel %vm114, %v95, 0
    %v160 = vsel %vm114, %v96, 0
    %v163 = vsel %vm114, %v97, 0
    %165 = vmatprep.subr.mxu0 0.0
    %166 = vmatpush1.xpose.msra.mxu0 %v118
    %167 = vmatprep.subr.mxu0 0.0
    %168 = vmatpush1.xpose.msra.mxu0 %v121
    %169 = vmatprep.subr.mxu0 0.0
    %170 = vmatpush1.xpose.msra.mxu0 %v124
    %171 = vmatprep.subr.mxu0 0.0
    %172 = vmatpush1.xpose.msra.mxu0 %v127
    %173 = vmatprep.subr.mxu0 0.0
    %174 = vmatpush1.xpose.msra.mxu0 %v130
    %175 = vmatprep.subr.mxu0 0.0
    %176 = vmatpush1.xpose.msra.mxu0 %v133
    %177 = vmatprep.subr.mxu0 0.0
    %178 = vmatpush1.xpose.msra.mxu0 %v136
    %179 = vmatprep.subr.mxu0 0.0
    %180 = vmatpush1.xpose.msra.mxu0 %v139
    %181 = vmatprep.subr.mxu0 0.0
    %182 = vmatpush1.xpose.msra.mxu0 %v142
    %183 = vmatprep.subr.mxu0 0.0
    %184 = vmatpush1.xpose.msra.mxu0 %v145
    %185 = vmatprep.subr.mxu0 0.0
    %186 = vmatpush1.xpose.msra.mxu0 %v148
    %187 = vmatprep.subr.mxu0 0.0
    %188 = vmatpush1.xpose.msra.mxu0 %v151
    %189 = vmatprep.subr.mxu0 0.0
    %190 = vmatpush1.xpose.msra.mxu0 %v154
    %191 = vmatprep.subr.mxu0 0.0
    %192 = vmatpush1.xpose.msra.mxu0 %v157
    %193 = vmatprep.subr.mxu0 0.0
    %194 = vmatpush1.xpose.msra.mxu0 %v160
    %195 = vmatprep.subr.mxu0 0.0
    %196 = vmatpush1.xpose.msra.mxu0 %v163
    %197 = vmatprep.subr.mxu0 0.0
    %198 = vmatpush1.xpose.msra.mxu0 0.0
    %199 = vmatprep.subr.mxu0 0.0
    %200 = vmatpush1.xpose.msra.mxu0 0.0
    %201 = vmatprep.subr.mxu0 0.0
    %202 = vmatpush1.xpose.msra.mxu0 0.0
    %203 = vmatprep.subr.mxu0 0.0
    %204 = vmatpush1.xpose.msra.mxu0 0.0
    %205 = vmatprep.subr.mxu0 0.0
    %206 = vmatpush1.xpose.msra.mxu0 0.0
    %207 = vmatprep.subr.mxu0 0.0
    %208 = vmatpush1.xpose.msra.mxu0 0.0
    %209 = vmatprep.subr.mxu0 0.0
    %210 = vmatpush1.xpose.msra.mxu0 0.0
    %211 = vmatprep.subr.mxu0 0.0
    %212 = vmatpush1.xpose.msra.mxu0 0.0
    %213 = vmatprep.subr.mxu0 0.0
    %214 = vmatpush1.xpose.msra.mxu0 0.0
    %215 = vmatprep.subr.mxu0 0.0
    %216 = vmatpush1.xpose.msra.mxu0 0.0
    %217 = vmatprep.subr.mxu0 0.0
    %218 = vmatpush1.xpose.msra.mxu0 0.0
    %219 = vmatprep.subr.mxu0 0.0
    %220 = vmatpush1.xpose.msra.mxu0 0.0
    %221 = vmatprep.subr.mxu0 0.0
    %222 = vmatpush1.xpose.msra.mxu0 0.0
    %223 = vmatprep.subr.mxu0 0.0
    %224 = vmatpush1.xpose.msra.mxu0 0.0
    %225 = vmatprep.subr.mxu0 0.0
    %226 = vmatpush1.xpose.msra.mxu0 0.0
    %227 = vmatprep.subr.mxu0 0.0
    %228 = vmatpush1.xpose.msra.mxu0 0.0
    %229 = vmatprep.mubr.f32.mxu0 0.0
    %230 = vmatmul.mubr.f32.gmra.mrb[0].mxu0 %v115
    %v231 = vpop.f32.mrb[0].mxu0
    %v232 = vadd.f32 0.0, %v231
    %v233 = vpop.f32.mrb[0].mxu0
    %234 = vdwg.mxu0
    %v235 = vsel %vm114, %v81, 0
    %v238 = vsel %vm114, %v98, 0
    %v241 = vsel %vm114, %v99, 0
    %v244 = vsel %vm114, %v100, 0
    %v247 = vsel %vm114, %v101, 0
    %v250 = vsel %vm114, %v102, 0
    %v253 = vsel %vm114, %v103, 0
    %v256 = vsel %vm114, %v104, 0
    %v259 = vsel %vm114, %v105, 0
    %v262 = vsel %vm114, %v106, 0
    %v265 = vsel %vm114, %v107, 0
    %v268 = vsel %vm114, %v108, 0
    %v271 = vsel %vm114, %v109, 0
    %v274 = vsel %vm114, %v110, 0
    %v277 = vsel %vm114, %v111, 0
    %v280 = vsel %vm114, %v112, 0
    %v283 = vsel %vm114, %v113, 0
    %285 = vmatprep.subr.mxu0 0.0
    %286 = vmatpush1.xpose.msra.mxu0 %v238
    %287 = vmatprep.subr.mxu0 0.0
    %288 = vmatpush1.xpose.msra.mxu0 %v241
    %289 = vmatprep.subr.mxu0 0.0
    %290 = vmatpush1.xpose.msra.mxu0 %v244
    %291 = vmatprep.subr.mxu0 0.0
    %292 = vmatpush1.xpose.msra.mxu0 %v247
    %293 = vmatprep.subr.mxu0 0.0
    %294 = vmatpush1.xpose.msra.mxu0 %v250
    %295 = vmatprep.subr.mxu0 0.0
    %296 = vmatpush1.xpose.msra.mxu0 %v253
    %297 = vmatprep.subr.mxu0 0.0
    %298 = vmatpush1.xpose.msra.mxu0 %v256
    %299 = vmatprep.subr.mxu0 0.0
    %300 = vmatpush1.xpose.msra.mxu0 %v259
    %301 = vmatprep.subr.mxu0 0.0
    %302 = vmatpush1.xpose.msra.mxu0 %v262
    %303 = vmatprep.subr.mxu0 0.0
    %304 = vmatpush1.xpose.msra.mxu0 %v265
    %305 = vmatprep.subr.mxu0 0.0
    %306 = vmatpush1.xpose.msra.mxu0 %v268
    %307 = vmatprep.subr.mxu0 0.0
    %308 = vmatpush1.xpose.msra.mxu0 %v271
    %309 = vmatprep.subr.mxu0 0.0
    %310 = vmatpush1.xpose.msra.mxu0 %v274
    %311 = vmatprep.subr.mxu0 0.0
    %312 = vmatpush1.xpose.msra.mxu0 %v277
    %313 = vmatprep.subr.mxu0 0.0
    %314 = vmatpush1.xpose.msra.mxu0 %v280
    %315 = vmatprep.subr.mxu0 0.0
    %316 = vmatpush1.xpose.msra.mxu0 %v283
    %317 = vmatprep.subr.mxu0 0.0
    %318 = vmatpush1.xpose.msra.mxu0 0.0
    %319 = vmatprep.subr.mxu0 0.0
    %320 = vmatpush1.xpose.msra.mxu0 0.0
    %321 = vmatprep.subr.mxu0 0.0
    %322 = vmatpush1.xpose.msra.mxu0 0.0
    %323 = vmatprep.subr.mxu0 0.0
    %324 = vmatpush1.xpose.msra.mxu0 0.0
    %325 = vmatprep.subr.mxu0 0.0
    %326 = vmatpush1.xpose.msra.mxu0 0.0
    %327 = vmatprep.subr.mxu0 0.0
    %328 = vmatpush1.xpose.msra.mxu0 0.0
    %329 = vmatprep.subr.mxu0 0.0
    %330 = vmatpush1.xpose.msra.mxu0 0.0
    %331 = vmatprep.subr.mxu0 0.0
    %332 = vmatpush1.xpose.msra.mxu0 0.0
    %333 = vmatprep.subr.mxu0 0.0
    %334 = vmatpush1.xpose.msra.mxu0 0.0
    %335 = vmatprep.subr.mxu0 0.0
    %336 = vmatpush1.xpose.msra.mxu0 0.0
    %337 = vmatprep.subr.mxu0 0.0
    %338 = vmatpush1.xpose.msra.mxu0 0.0
    %339 = vmatprep.subr.mxu0 0.0
    %340 = vmatpush1.xpose.msra.mxu0 0.0
    %341 = vmatprep.subr.mxu0 0.0
    %342 = vmatpush1.xpose.msra.mxu0 0.0
    %343 = vmatprep.subr.mxu0 0.0
    %344 = vmatpush1.xpose.msra.mxu0 0.0
    %345 = vmatprep.subr.mxu0 0.0
    %346 = vmatpush1.xpose.msra.mxu0 0.0
    %347 = vmatprep.subr.mxu0 0.0
    %348 = vmatpush1.xpose.msra.mxu0 0.0
    %349 = vmatprep.mubr.f32.mxu0 0.0
    %350 = vmatmul.mubr.f32.gmra.mrb[0].mxu0 %v235
    %v351 = vpop.f32.mrb[0].mxu0
    %v352 = vadd.f32 0.0, %v351
    %v353 = vpop.f32.mrb[0].mxu0
    %354 = vdwg.mxu0
    %v355 = vlaneseq
    %v356 = vand.u32 %v355, 127
    %s357 = smul.u32 0, 128
    %v358 = vstv %s357
    %v359 = vadd.s32 %v356, %v358
    %vm360 = vcmp.lt.s32.totalorder %v359, 8
    %v363 = vrot.slane %v352, 7
    %vm364 = vcmask 1041409
    %v365 = vsel %vm364, %v363, %v232
    %v367 = vsel %vm360, %v365, -1e+30
    %s368 = sshra.s32 %s357, 7
    %s369 = sand.u32 %s357, 127
    %s370 = scalar_lea.vmem [#allocation7], %s368
    %371 = vst [vmem:[%s370] sm:$0x3] %v367
    %v372 = vld [vmem:[#allocation2] sm:$0x3]
    %vm373 = vcmask 1041408
    %v374 = vsel %vm373, %v367, -inf
    %375 = vmax.xlane.f32.xlu0 %v374
    %v376 = vpop.xlane.xlu0 %375
    %v377 = vmax.f32 %v372, %v376
    %v378 = vld [vmem:[#allocation3] sm:$0x3]
    %v379 = vsub.f32 %v372, %v377
    %v380 = vmul.f32 %v379, 1.442695
    %v381 = vpow.pop %v380
    %v382 = vmul.f32 %v378, %v381
    %384 = vset.pattern.permute.xlu0 0
    %385 = vperm.xlu0 %384, %v377
    %v386 = vpop.permute.xlu0 %385
    %v388 = vsub.f32 %v367, %v386
    %v389 = vmul.f32 %v388, 1.442695
    %v390 = vpow.pop %v389
    %v391 = vsel %vm373, %v390, 0.0
    %392 = vadd.xlane.f32.xlu0 %v391
    %v393 = vpop.xlane.xlu0 %392
    %v394 = vadd.f32 %v382, %v393
    %vm395 = vcmask 1024
    %396 = vst.msk [vmem:[#allocation3] sm:$0x3] %vm395, %v394
    %397 = vst.msk [vmem:[#allocation2] sm:$0x3] %vm395, %v377
    // Predicated region
    $region18: #{tpu_custom_call.1} parent=1 // pred_check
      %p398 = pneg %p51
    $region19: #{tpu_custom_call.1} parent=1 // pred_check_branch
      %400 = sbr.rel (%p398) target = $region21
    $region20: #{tpu_custom_call.1} parent=1 // pred_region
      %v401 = vld [vmem:[#allocation7] sm:$0x3]
      %v402 = vld [vmem:[#allocation2] sm:$0x3]
      %404 = vset.pattern.permute.xlu0 0
      %405 = vperm.xlu0 %404, %v402
      %v406 = vpop.permute.xlu0 %405
      %v408 = vsub.f32 %v401, %v406
      %v409 = vmul.f32 %v408, 1.442695
      %v410 = vpow.pop %v409
      %v411 = vld [vmem:[#allocation3] sm:$0x3]
      %413 = vset.pattern.permute.xlu0 0
      %414 = vperm.xlu0 %413, %v411
      %v415 = vpop.permute.xlu0 %414
      %v417 = vrcp.pop %v415
      %v418 = vmul.f32 %v410, %v417
      %419 = vst [vmem:[#allocation7] sm:$0x3] %v418
    $region21: #{tpu_custom_call.1} parent=1 // pred_fallthru
      _
    // Predicated region
    $region22: #{tpu_custom_call.1} parent=1 // pred_check
      _
    $region23: #{tpu_custom_call.1} parent=1 // pred_check_branch
      %421 = sbr.rel (0) target = $region25
    $region24: #{tpu_custom_call.1} parent=1 // pred_region
      %s423 = ssub.s32 32, 32
      %424 = vsyncadd [#allocation6], %s423
      %s426 = sshll.u32 [#allocation7], 4
      %s427 = int_to_ptr.vmem [resolvable:$true] %s426
      %429 = dma.vmem_to_hbm [thread:$0]  %s427, 32, %s2, [#allocation6]
    $region25: #{tpu_custom_call.1} parent=1 // pred_fallthru
      _
    // Predicated region
    $region26: #{tpu_custom_call.1} parent=1 // pred_check
      _
    $region27: #{tpu_custom_call.1} parent=1 // pred_check_branch
      %431 = sbr.rel (0) target = $region29
    $region28: #{tpu_custom_call.1} parent=1 // pred_region
      %432 = dma.done [#allocation6], 32
    $region29: #{tpu_custom_call.1} parent=1 // pred_fallthru
      _
    %433 = vsyncpa [#allocation5], 1
    %434 = vsyncpa [#allocation6], 1

</llo_original>
